<compile_context>
chip_gen: v5e
topology: v5e:2x2
jax: 0.10.0
libtpu: 0.0.40
codegen_flags: <defaults>
</compile_context>

<pallas_src>
import math

import jax
import jax.numpy as jnp
from jax import lax
from jax.experimental import pallas as pl
from jax.experimental.pallas import tpu as pltpu

BN_EPS = 1e-5


# ---------------------------------------------------------------------------
# Kernels
# ---------------------------------------------------------------------------

def _bn_exp_epilogue(x, gamma_ref, beta_ref):
    """Training-mode BatchNorm1d over axis 0 + exp, fused affine form."""
    mean = jnp.mean(x, axis=0, keepdims=True)                    # [1, Tt]
    diff = x - mean
    var = jnp.mean(diff * diff, axis=0, keepdims=True)           # [1, Tt] (biased)
    scale = gamma_ref[...] * lax.rsqrt(var + BN_EPS)              # EUP rsqrt
    shift = beta_ref[...] - mean * scale
    return jnp.exp(x * scale + shift)                             # EUP exp


def _single_k_kernel(h_ref, w_ref, gamma_ref, beta_ref, out_ref):
    # One grid step per T tile; the whole (padded) H dimension in one block.
    #   h_ref:     [B, H_pad]  bf16
    #   w_ref:     [H_pad, Tt] bf16
    #   gamma/beta:[1, Tt]     f32
    #   out_ref:   [B, Tt]     f32
    x = jnp.dot(h_ref[...], w_ref[...], preferred_element_type=jnp.float32)
    out_ref[...] = _bn_exp_epilogue(x, gamma_ref, beta_ref)


def _multi_k_kernel(h_ref, w_ref, gamma_ref, beta_ref, out_ref):
    # Grid (T tiles, H tiles); H is the reduction axis (last, "arbitrary").
    # out_ref's block index is constant along H, so it stays VMEM-resident and
    # doubles as the f32 accumulator (no scratch).
    h_idx = pl.program_id(1)
    partial = jnp.dot(h_ref[...], w_ref[...], preferred_element_type=jnp.float32)

    @pl.when(h_idx == 0)
    def _():
        out_ref[...] = partial

    @pl.when(h_idx > 0)
    def _():
        out_ref[...] += partial

    @pl.when(h_idx == pl.num_programs(1) - 1)
    def _():
        out_ref[...] = _bn_exp_epilogue(out_ref[...], gamma_ref, beta_ref)


# ---------------------------------------------------------------------------
# Tiling / wrapper
# ---------------------------------------------------------------------------

def _round_up(x, m):
    return -(-x // m) * m


def _vmem_capacity_bytes():
    try:
        return int(pltpu.get_tpu_info().vmem_capacity_bytes)
    except Exception:
        return 64 * 1024 * 1024  # conservative: v7x per-TC VMEM


def _select_tiles(B, H, T, vmem_cap):
    """B-aware, VMEM-budgeted tile selection. Returns (Ht, Tt, H_pad, T_pad, vmem_limit)."""
    H128 = _round_up(H, 128)
    T128 = _round_up(T, 128)
    budget = int(vmem_cap * 0.6)  # headroom for compiler scratch / semaphores

    # --- T (output / lane) tile: lane-dense multiple of 128, wide DMA rows,
    # and >=2 blocks when possible so the 'parallel' axis shards over v7x TCs.
    if T128 <= 128:
        Tt = 128
    else:
        Tt = max(128, min(512, _round_up(T128 // 2, 128)))
    T_pad = _round_up(T128, Tt)

    def vmem_use(Ht):
        return (2 * B * Ht * 2       # hidden  (bf16, double-buffered)
                + 2 * Ht * Tt * 2    # weight  (bf16, double-buffered)
                + 2 * B * Tt * 4)    # output  (f32, resident + writeback buf)

    # --- H (reduction) tile: a single block if it fits (hidden DMA'd exactly
    # once, no reduction grid axis), else the largest 128-multiple that fits.
    if vmem_use(H128) <= budget:
        Ht = H128
    else:
        ht_cap = (budget - 8 * B * Tt) // (4 * (B + Tt))
        ht_cap = max(128, min(H128, (ht_cap // 128) * 128))
        # Prefer an exact multiple-of-128 divisor of H128 (no padded-K work);
        # fall back to padding H up to a multiple of ht_cap if divisors are
        # pathologically small.
        Ht = 128
        for cand in range(ht_cap, 127, -128):
            if H128 % cand == 0:
                Ht = cand
                break
        if Ht * 2 < ht_cap:
            Ht = ht_cap
    H_pad = _round_up(H128, Ht)

    vmem_limit = int(min(vmem_cap, max(vmem_use(Ht) + (8 << 20), 32 << 20)))
    return Ht, Tt, H_pad, T_pad, vmem_limit


def make_hidden_to_dirichlet(weight_t, bias, gamma, beta, *, batch_size):
    """Build the forward pass once (params pre-padded / pre-cast out of the hot path).

    weight_t: [H, T] (transposed nn.Linear weight); bias/gamma/beta: [1, T].
    `bias` is accepted to mirror nn.Linear but unused: training-mode
    BatchNorm1d subtracts the per-column batch mean, cancelling it exactly.
    Returns a jitted callable hidden[B, H] -> alphas[B, T] (Dirichlet
    concentrations).
    """
    del bias
    B = int(batch_size)
    H, T = weight_t.shape

    vmem_cap = _vmem_capacity_bytes()
    Ht, Tt, H_pad, T_pad, vmem_limit = _select_tiles(B, H, T, vmem_cap)

    # One-time parameter prep (not per-call HBM traffic).
    w_bf16 = jnp.pad(weight_t, ((0, H_pad - H), (0, T_pad - T))).astype(jnp.bfloat16)
    gamma_p = jnp.pad(gamma.astype(jnp.float32), ((0, 0), (0, T_pad - T)))
    beta_p = jnp.pad(beta.astype(jnp.float32), ((0, 0), (0, T_pad - T)))

    t_blocks = T_pad // Tt
    h_blocks = H_pad // Ht

    if h_blocks == 1:
        grid = (t_blocks,)
        kernel = _single_k_kernel
        in_specs = [
            pl.BlockSpec((B, H_pad), lambda t: (0, 0)),   # hidden (DMA'd once)
            pl.BlockSpec((H_pad, Tt), lambda t: (0, t)),  # weight
            pl.BlockSpec((1, Tt), lambda t: (0, t)),      # gamma
            pl.BlockSpec((1, Tt), lambda t: (0, t)),      # beta
        ]
        out_specs = pl.BlockSpec((B, Tt), lambda t: (0, t))
        dim_sem = ("parallel",)
    else:
        grid = (t_blocks, h_blocks)  # reduction axis last
        kernel = _multi_k_kernel
        in_specs = [
            pl.BlockSpec((B, Ht), lambda t, h: (0, h)),   # hidden
            pl.BlockSpec((Ht, Tt), lambda t, h: (h, t)),  # weight
            pl.BlockSpec((1, Tt), lambda t, h: (0, t)),   # gamma
            pl.BlockSpec((1, Tt), lambda t, h: (0, t)),   # beta
        ]
        out_specs = pl.BlockSpec((B, Tt), lambda t, h: (0, t))
        dim_sem = ("parallel", "arbitrary")

    call = pl.pallas_call(
        kernel,
        out_shape=jax.ShapeDtypeStruct((B, T_pad), jnp.float32),
        grid_spec=pltpu.PrefetchScalarGridSpec(
            num_scalar_prefetch=0,
            grid=grid,
            in_specs=in_specs,
            out_specs=out_specs,
        ),
        compiler_params=pltpu.CompilerParams(
            dimension_semantics=dim_sem,
            vmem_limit_bytes=vmem_limit,
        ),
    )

    def forward(hidden):
        assert hidden.shape == (B, H), (hidden.shape, (B, H))
        if H_pad != H:
            hidden = jnp.pad(hidden, ((0, 0), (0, H_pad - H)))
        h_bf16 = hidden.astype(jnp.bfloat16)  # only per-call prep: cast (+pad)
        out = call(h_bf16, w_bf16, gamma_p, beta_p)
        return out[:, :T] if T_pad != T else out

    return jax.jit(forward)


# ---------------------------------------------------------------------------
# Pure-JAX reference (training-mode BN) and self-test
# ---------------------------------------------------------------------------

def _reference(hidden, weight_t, bias, gamma, beta, *, matmul_dtype=jnp.float32):
    x = jnp.dot(hidden.astype(matmul_dtype), weight_t.astype(matmul_dtype),
                preferred_element_type=jnp.float32) + bias
    mean = jnp.mean(x, axis=0, keepdims=True)
    var = jnp.mean((x - mean) ** 2, axis=0, keepdims=True)
    y = gamma * (x - mean) / jnp.sqrt(var + BN_EPS) + beta
    return jnp.exp(y)


if __name__ == "__main__":
    # Small synthetic shapes implied by the module: hidden [B, hidden_size].
    B, H, T = 8, 32, 16  # batch, hidden_size, num_topics

    key = jax.random.PRNGKey(0)
    k_h, k_w, k_b = jax.random.split(key, 3)

    hidden = jax.random.normal(k_h, (B, H), dtype=jnp.float32)

    # PyTorch Linear init: U(-1/sqrt(H), 1/sqrt(H)); BN defaults gamma=1, beta=0.
    bound = 1.0 / math.sqrt(H)
    weight = jax.random.uniform(k_w, (T, H), minval=-bound, maxval=bound,
                                dtype=jnp.float32)           # PyTorch layout [T, H]
    weight_t = weight.T                                       # kernel layout [H, T]
    bias = jax.random.uniform(k_b, (1, T), minval=-bound, maxval=bound,
                              dtype=jnp.float32)
    gamma = jnp.ones((1, T), dtype=jnp.float32)
    beta = jnp.zeros((1, T), dtype=jnp.float32)

    fwd = make_hidden_to_dirichlet(weight_t, bias, gamma, beta, batch_size=B)
    alphas = jax.block_until_ready(fwd(hidden))

    # Strict check against a reference using the same bf16 MXU operands
    # (valid here: H fits a single K tile, so accumulation order matches).
    ref_bf16 = _reference(hidden, weight_t, bias, gamma, beta,
                          matmul_dtype=jnp.bfloat16)
    # Looser sanity check against full-f32 PyTorch-equivalent math.
    ref_f32 = _reference(hidden, weight_t, bias, gamma, beta)

    assert alphas.shape == (B, T)
    assert bool(jnp.all(alphas > 0.0))
    assert bool(jnp.allclose(alphas, ref_bf16, rtol=1e-3, atol=1e-3))
    assert bool(jnp.allclose(alphas, ref_f32, rtol=5e-2, atol=5e-2))

    print("KERNEL_OK")
</pallas_src>

<mosaic_0001>
module attributes {stable_mosaic.version = 11 : i64} {
  func.func @_single_k_kernel(%arg0: i32, %arg1: memref<8x128xbf16, #tpu.memory_space<vmem>>, %arg2: memref<128x128xbf16, #tpu.memory_space<vmem>>, %arg3: memref<1x128xf32, #tpu.memory_space<vmem>>, %arg4: memref<1x128xf32, #tpu.memory_space<vmem>>, %arg5: memref<8x128xf32, #tpu.memory_space<vmem>>) attributes {dimension_semantics = [#tpu.dimension_semantics<parallel>], iteration_bounds = array<i64: 1>, scalar_prefetch = 0 : i64, scratch_operands = 0 : i64, tpu.core_type = #tpu.core_type<tc>, window_params = [{pipeline_mode = #tpu.pipeline_mode<synchronous>, transform_indices = @transform_0, window_bounds = array<i64: 8, 128>}, {transform_indices = @transform_1, window_bounds = array<i64: 128, 128>}, {transform_indices = @transform_2, window_bounds = array<i64: 1, 128>}, {transform_indices = @transform_3, window_bounds = array<i64: 1, 128>}, {transform_indices = @transform_4, window_bounds = array<i64: 8, 128>}]} {
    %c0 = arith.constant 0 : index
    %c0_0 = arith.constant 0 : index
    %0 = vector.load %arg1[%c0, %c0_0] : memref<8x128xbf16, #tpu.memory_space<vmem>>, vector<8x128xbf16>
    %c0_1 = arith.constant 0 : index
    %c0_2 = arith.constant 0 : index
    %1 = vector.load %arg2[%c0_1, %c0_2] : memref<128x128xbf16, #tpu.memory_space<vmem>>, vector<128x128xbf16>
    %cst = arith.constant dense<0.000000e+00> : vector<8x128xf32>
    %2 = tpu.matmul %0, %1, %cst {dimension_numbers = #tpu.dot_dimension_numbers<[1], [0], [0], [1], [0, 0, 1, 1], [], []>} : vector<8x128xbf16>, vector<128x128xbf16>, vector<8x128xf32> -> vector<8x128xf32>
    %cst_3 = arith.constant dense<0.000000e+00> : vector<128xf32>
    %3 = vector.multi_reduction <add>, %2, %cst_3 [0] : vector<8x128xf32> to vector<128xf32>
    %4 = vector.shape_cast %3 : vector<128xf32> to vector<1x128xf32>
    %cst_4 = arith.constant 8.000000e+00 : f32
    %5 = vector.broadcast %cst_4 : f32 to vector<1x128xf32>
    %6 = arith.divf %4, %5 : vector<1x128xf32>
    %7 = vector.broadcast %6 : vector<1x128xf32> to vector<8x128xf32>
    %8 = arith.subf %2, %7 : vector<8x128xf32>
    %9 = arith.mulf %8, %8 : vector<8x128xf32>
    %cst_5 = arith.constant dense<0.000000e+00> : vector<128xf32>
    %10 = vector.multi_reduction <add>, %9, %cst_5 [0] : vector<8x128xf32> to vector<128xf32>
    %11 = vector.shape_cast %10 : vector<128xf32> to vector<1x128xf32>
    %cst_6 = arith.constant 8.000000e+00 : f32
    %12 = vector.broadcast %cst_6 : f32 to vector<1x128xf32>
    %13 = arith.divf %11, %12 : vector<1x128xf32>
    %c0_7 = arith.constant 0 : index
    %c0_8 = arith.constant 0 : index
    %14 = vector.load %arg3[%c0_7, %c0_8] : memref<1x128xf32, #tpu.memory_space<vmem>>, vector<1x128xf32>
    %cst_9 = arith.constant 9.99999974E-6 : f32
    %15 = vector.broadcast %cst_9 : f32 to vector<1x128xf32>
    %16 = arith.addf %13, %15 : vector<1x128xf32>
    %17 = math.rsqrt %16 : vector<1x128xf32>
    %18 = arith.mulf %14, %17 : vector<1x128xf32>
    %c0_10 = arith.constant 0 : index
    %c0_11 = arith.constant 0 : index
    %19 = vector.load %arg4[%c0_10, %c0_11] : memref<1x128xf32, #tpu.memory_space<vmem>>, vector<1x128xf32>
    %20 = arith.mulf %6, %18 : vector<1x128xf32>
    %21 = arith.subf %19, %20 : vector<1x128xf32>
    %22 = vector.broadcast %18 : vector<1x128xf32> to vector<8x128xf32>
    %23 = arith.mulf %2, %22 : vector<8x128xf32>
    %24 = vector.broadcast %21 : vector<1x128xf32> to vector<8x128xf32>
    %25 = arith.addf %23, %24 : vector<8x128xf32>
    %26 = math.exp %25 : vector<8x128xf32>
    %c0_12 = arith.constant 0 : index
    %c0_13 = arith.constant 0 : index
    %27 = vector.load %arg5[%c0_12, %c0_13] : memref<8x128xf32, #tpu.memory_space<vmem>>, vector<8x128xf32>
    tpu.vector_store %arg5[%c0_12, %c0_13], %26 {strides = array<i32>} : memref<8x128xf32, #tpu.memory_space<vmem>>, vector<8x128xf32>,
    return
  }
  func.func @transform_0(%arg0: i32) -> (i32, i32) {
    %c0_i32 = arith.constant 0 : i32
    %c0_i32_0 = arith.constant 0 : i32
    %c0_i32_1 = arith.constant 0 : i32
    return %c0_i32, %c0_i32_0 : i32, i32
  }
  func.func @transform_1(%arg0: i32) -> (i32, i32) {
    %c0_i32 = arith.constant 0 : i32
    %c0_i32_0 = arith.constant 0 : i32
    return %c0_i32, %arg0 : i32, i32
  }
  func.func @transform_2(%arg0: i32) -> (i32, i32) {
    %c0_i32 = arith.constant 0 : i32
    %c0_i32_0 = arith.constant 0 : i32
    return %c0_i32, %arg0 : i32, i32
  }
  func.func @transform_3(%arg0: i32) -> (i32, i32) {
    %c0_i32 = arith.constant 0 : i32
    %c0_i32_0 = arith.constant 0 : i32
    return %c0_i32, %arg0 : i32, i32
  }
  func.func @transform_4(%arg0: i32) -> (i32, i32) {
    %c0_i32 = arith.constant 0 : i32
    %c0_i32_0 = arith.constant 0 : i32
    return %c0_i32, %arg0 : i32, i32
  }
}

</mosaic_0001>

<llo_original>
// kernel: forward.1
$region0: #{forward.1}
  #allocation0 [shape = 'u32[]', space=smem, size = 0x4, offset = 0x4, fixed_abs, tag = 'smem constant byte address 0x4 - core index']
  #allocation1 [shape = 'u32[72,128]{1,0:T(1,128)}', space=vmem, size = 0x9000, scoped, tag = 'internal scratch']
  %s0 = inlined_call_operand.vmem [shape: bf16[8,128], index: 0, kind: input, shape index: {}]
  %s1 = inlined_call_operand.hbm [shape: bf16[128,128], index: 1, kind: input, shape index: {}]
  %s2 = inlined_call_operand.vmem [shape: f32[1,128], index: 2, kind: input, shape index: {}]
  %s3 = inlined_call_operand.vmem [shape: f32[1,128], index: 3, kind: input, shape index: {}]
  %s4 = inlined_call_operand.hbm [shape: f32[8,128], index: 4, kind: output, shape index: {}]
  %s5 = sld [smem:[#allocation0]]
  $region30: #{forward.1} parent=0
    _
  %s7 = ssub.s32 1, %s5
  %s8 = scalar_select 0, %s7, %s5
  $region1: #{forward.1} parent=0
    #allocation2 [shape = 'u8[32768]{0}', space=vmem, size = 0x8000, scoped, tag = 'input window, operand 1, single buffered']
    #allocation3 [shape = 's32[1]{0}', space=sflag, size = 0x4, scoped, tag = 'scoped memory for forward.1']
    #allocation4 [shape = 's32[1]{0}', space=sflag, size = 0x4, scoped, tag = 'scoped memory for forward.1']
    #allocation5 [shape = 'u8[4096]{0}', space=vmem, size = 0x1000, scoped, tag = 'output window, operand 0, single buffered']
    %9 = vsyncpa [#allocation3], 0
    %10 = vsyncpa [#allocation4], 0
    // Predicated region
    $region2: #{forward.1} parent=1 // pred_check
      _
    $region3: #{forward.1} parent=1 // pred_check_branch
      %12 = sbr.rel (0) target = $region5
    $region4: #{forward.1} parent=1 // pred_region
      _
    $region5: #{forward.1} parent=1 // pred_fallthru
      _
    // Predicated region
    $region6: #{forward.1} parent=1 // pred_check
      _
    $region7: #{forward.1} parent=1 // pred_check_branch
      %14 = sbr.rel (0) target = $region9
    $region8: #{forward.1} parent=1 // pred_region
      %16 = vsyncadd [#allocation3], 0
      %s17 = sshll.u32 %s1, 4
      %s18 = int_to_ptr.hbm [resolvable:$true] %s17
      %s19 = sshll.u32 [#allocation2], 4
      %s20 = int_to_ptr.vmem [resolvable:$true] %s19
      %25 = dma.hbm_to_vmem [thread:$0]  %s18, 1024, %s20, [#allocation3], 64, 64, 4
    $region9: #{forward.1} parent=1 // pred_fallthru
      _
    // Predicated region
    $region10: #{forward.1} parent=1 // pred_check
      _
    $region11: #{forward.1} parent=1 // pred_check_branch
      %27 = sbr.rel (0) target = $region13
    $region12: #{forward.1} parent=1 // pred_region
      _
    $region13: #{forward.1} parent=1 // pred_fallthru
      _
    // Predicated region
    $region14: #{forward.1} parent=1 // pred_check
      _
    $region15: #{forward.1} parent=1 // pred_check_branch
      %29 = sbr.rel (0) target = $region17
    $region16: #{forward.1} parent=1 // pred_region
      _
    $region17: #{forward.1} parent=1 // pred_fallthru
      _
    // Predicated region
    $region18: #{forward.1} parent=1 // pred_check
      _
    $region19: #{forward.1} parent=1 // pred_check_branch
      %31 = sbr.rel (0) target = $region21
    $region20: #{forward.1} parent=1 // pred_region
      %33 = dma.done [#allocation3], 1024
    $region21: #{forward.1} parent=1 // pred_fallthru
      _
    %v34 = vld [vmem:[%s0] sm:$0xf]
    %v35 = vld [vmem:[#allocation2] sm:$0xf]
    %v36 = vld [vmem:[#allocation2 + $0x4] sm:$0xf]
    %v37 = vld [vmem:[#allocation2 + $0x8] sm:$0xf]
    %v38 = vld [vmem:[#allocation2 + $0xc] sm:$0xf]
    %v39 = vld [vmem:[#allocation2 + $0x10] sm:$0xf]
    %v40 = vld [vmem:[#allocation2 + $0x14] sm:$0xf]
    %v41 = vld [vmem:[#allocation2 + $0x18] sm:$0xf]
    %v42 = vld [vmem:[#allocation2 + $0x1c] sm:$0xf]
    %v43 = vld [vmem:[#allocation2 + $0x20] sm:$0xf]
    %v44 = vld [vmem:[#allocation2 + $0x24] sm:$0xf]
    %v45 = vld [vmem:[#allocation2 + $0x28] sm:$0xf]
    %v46 = vld [vmem:[#allocation2 + $0x2c] sm:$0xf]
    %v47 = vld [vmem:[#allocation2 + $0x30] sm:$0xf]
    %v48 = vld [vmem:[#allocation2 + $0x34] sm:$0xf]
    %v49 = vld [vmem:[#allocation2 + $0x38] sm:$0xf]
    %v50 = vld [vmem:[#allocation2 + $0x3c] sm:$0xf]
    %v67 = vunpack.c.l.b16 %v35
    %v68 = vunpack.c.l.b16 %v36
    %v69 = vunpack.c.l.b16 %v37
    %v70 = vunpack.c.l.b16 %v38
    %v71 = vunpack.c.l.b16 %v39
    %v72 = vunpack.c.l.b16 %v40
    %v73 = vunpack.c.l.b16 %v41
    %v74 = vunpack.c.l.b16 %v42
    %v75 = vunpack.c.l.b16 %v43
    %v76 = vunpack.c.l.b16 %v44
    %v77 = vunpack.c.l.b16 %v45
    %v78 = vunpack.c.l.b16 %v46
    %v79 = vunpack.c.l.b16 %v47
    %v80 = vunpack.c.l.b16 %v48
    %v81 = vunpack.c.l.b16 %v49
    %v82 = vunpack.c.l.b16 %v50
    %v83 = vpack.c.b16 %v68, %v67
    %v84 = vpack.c.b16 %v70, %v69
    %v85 = vpack.c.b16 %v72, %v71
    %v86 = vpack.c.b16 %v74, %v73
    %v87 = vpack.c.b16 %v76, %v75
    %v88 = vpack.c.b16 %v78, %v77
    %v89 = vpack.c.b16 %v80, %v79
    %v90 = vpack.c.b16 %v82, %v81
    %99 = vmatpush.bf16.msra.mxu0 %v90
    %100 = vmatpush.bf16.msra.mxu0 %v89
    %101 = vmatpush.bf16.msra.mxu0 %v88
    %102 = vmatpush.bf16.msra.mxu0 %v87
    %103 = vmatpush.bf16.msra.mxu0 %v86
    %104 = vmatpush.bf16.msra.mxu0 %v85
    %105 = vmatpush.bf16.msra.mxu0 %v84
    %106 = vmatpush.bf16.msra.mxu0 %v83
    %107 = vmatmul.bf16.gmra.mxu0 %v34
    %v108 = vpop.f32.mrf.mxu0
    %v109 = vadd.f32 0.0, %v108
    %v110 = vpop.f32.mrf.mxu0
    %111 = vdwg.mxu0
    %v112 = vrot.slane %v109, 4
    %v113 = vadd.f32 %v109, %v112
    %v114 = vrot.slane %v113, 2
    %v115 = vadd.f32 %v113, %v114
    %v116 = vrot.slane %v115, 1
    %v117 = vadd.f32 %v115, %v116
    %v118 = vrcp.pop 8.0
    %v119 = vmul.f32 8.0, %v118
    %v120 = vsub.f32 1.0, %v119
    %v121 = vmul.f32 %v118, %v120
    %v122 = vadd.f32 %v118, %v121
    %vm123 = vweird.f32 %v118
    %v124 = vsel %vm123, %v118, %v122
    %v125 = vmul.f32 %v117, %v124
    %v126 = vsub.f32 %v109, %v125
    %v127 = vmul.f32 %v126, %v126
    %v128 = vrot.slane %v127, 4
    %v129 = vadd.f32 %v127, %v128
    %v130 = vrot.slane %v129, 2
    %v131 = vadd.f32 %v129, %v130
    %v132 = vrot.slane %v131, 1
    %v133 = vadd.f32 %v131, %v132
    %v134 = vmul.f32 %v133, %v124
    %v135 = vld [vmem:[%s2] sm:$0x1]
    %v136 = vadd.f32 %v134, 1e-05
    %v137 = vrsqrt.pop %v136
    %v138 = vmul.f32 %v137, %v136
    %v139 = vmul.f32 %v138, %v137
    %v140 = vmul.f32 0.5, %v139
    %v141 = vsub.f32 1.5, %v140
    %v142 = vmul.f32 %v137, %v141
    %vm143 = vweird.f32 %v136
    %vm144 = vweird.f32 %v137
    %vm145 = vmor %vm143, %vm144
    %v146 = vsel %vm145, %v137, %v142
    %v147 = vmul.f32 %v135, %v146
    %v148 = vld [vmem:[%s3] sm:$0x1]
    %v149 = vmul.f32 %v125, %v147
    %v150 = vsub.f32 %v148, %v149
    %v152 = vperm.slane %v147, 0
    %v154 = vmul.f32 %v109, %v152
    %v156 = vperm.slane %v150, 0
    %v158 = vadd.f32 %v154, %v156
    %v159 = vmul.f32 %v158, 1.442695
    %v160 = vpow.pop %v159
    %161 = vst [vmem:[#allocation5] sm:$0xff] %v160
    // Predicated region
    $region22: #{forward.1} parent=1 // pred_check
      _
    $region23: #{forward.1} parent=1 // pred_check_branch
      %163 = sbr.rel (0) target = $region25
    $region24: #{forward.1} parent=1 // pred_region
      %165 = vsyncadd [#allocation4], 0
      %s167 = sshll.u32 [#allocation5], 4
      %s168 = int_to_ptr.vmem [resolvable:$true] %s167
      %s169 = sshll.u32 %s4, 4
      %s170 = int_to_ptr.hbm [resolvable:$true] %s169
      %172 = dma.vmem_to_hbm [thread:$0]  %s168, 128, %s170, [#allocation4]
    $region25: #{forward.1} parent=1 // pred_fallthru
      _
    // Predicated region
    $region26: #{forward.1} parent=1 // pred_check
      _
    $region27: #{forward.1} parent=1 // pred_check_branch
      %174 = sbr.rel (0) target = $region29
    $region28: #{forward.1} parent=1 // pred_region
      %176 = dma.done [#allocation4], 128
    $region29: #{forward.1} parent=1 // pred_fallthru
      _
    %177 = vsyncpa [#allocation3], 1
    %178 = vsyncpa [#allocation4], 1

</llo_original>
